<compile_context>
chip_gen: v5e
topology: v5e:2x2
jax: 0.10.0
libtpu: 0.0.40
codegen_flags: <defaults>
</compile_context>

<pallas_src>
import functools
import numpy as np
import jax
import jax.numpy as jnp
from jax.experimental import pallas as pl
from jax.experimental.pallas import tpu as pltpu


# ----------------------------------------------------------------------------
# Pallas kernel
# ----------------------------------------------------------------------------
def _layernorm_kernel(x_ref, g_ref, b_ref, o_ref, *, eps, inv_c):
    """Fused per-position channel LayerNorm.

    x_ref: (Nb, C, T)  input tile in the caller's dtype (T = lane tile of H*W)
    g_ref: (1, C, 1)   per-channel scale (f32)
    b_ref: (1, C, 1)   per-channel shift (f32)
    o_ref: (Nb, C, T)  output tile in the caller's dtype
    """
    x = x_ref[...].astype(jnp.float32)                         # compute in f32
    mean = jnp.sum(x, axis=1, keepdims=True) * inv_c           # (Nb, 1, T)
    centered = x - mean
    var = jnp.sum(centered * centered, axis=1, keepdims=True) * inv_c
    inv = pl.reciprocal(jnp.sqrt(var) + eps)                   # exact; eps on std
    y = centered * inv * g_ref[...] + b_ref[...]
    o_ref[...] = y.astype(o_ref.dtype)


# ----------------------------------------------------------------------------
# Tiling
# ----------------------------------------------------------------------------
def _choose_tiles(n, c, hw, itemsize, per_block_bytes=2 * 1024 * 1024):
    """Pick (Nb, T, grid) so each block is ~per_block_bytes of *padded* VMEM.

    Accounts for channel-axis sublane padding (f32 tiles are (8,128), bf16
    (16,128), int8 (32,128)), so C=4 costs 8 f32 sublanes worth of VMEM.
    """
    sub = 8 if itemsize >= 4 else (16 if itemsize == 2 else 32)
    c_pad = -(-c // sub) * sub
    lane_bytes = c_pad * itemsize                      # padded bytes / lane / batch row
    max_lanes = max(128, per_block_bytes // lane_bytes)

    if hw <= max_lanes:
        # Whole H*W row fits: fully contiguous per-row DMA. Fold batch in.
        t = hw
        nb = min(n, max(1, max_lanes // max(hw, 1)))
        if n > 1:                                      # keep >=2 parallel grid steps (v7x: 2 TCs)
            nb = min(nb, max(1, n // 2))
        while n % nb != 0:                             # avoid ragged batch blocks
            nb -= 1
        grid = (n // nb, 1)
        if grid == (1, 1) and hw >= 256:               # single batch: split the lane axis instead
            t = max(128, (-(-((hw + 1) // 2) // 128)) * 128)
            grid = (1, pl.cdiv(hw, t))
    else:
        # H*W too large for one block: tile the lane axis (multiple of 128).
        nb = 1
        t = min(hw, max_lanes)
        t = max(128, (t // 128) * 128)
        grid = (n, pl.cdiv(hw, t))
    return nb, t, grid


# ----------------------------------------------------------------------------
# Wrapper
# ----------------------------------------------------------------------------
def layernorm_forward(x_nchw, g, b, eps=1e-5):
    """LayerNorm forward. x: (N, C, H, W); g, b: (1, C, 1, 1) (or any C-sized shape)."""
    N, C, H, W = x_nchw.shape
    hw = H * W
    x3 = x_nchw.reshape(N, C, hw)                      # free reshape; keep caller dtype for HBM I/O
    nb, t, grid = _choose_tiles(N, C, hw, x3.dtype.itemsize)

    g3 = g.reshape(1, C, 1).astype(jnp.float32)
    b3 = b.reshape(1, C, 1).astype(jnp.float32)

    out = pl.pallas_call(
        functools.partial(_layernorm_kernel, eps=float(eps), inv_c=1.0 / C),
        out_shape=jax.ShapeDtypeStruct((N, C, hw), x3.dtype),
        grid=grid,
        in_specs=[
            pl.BlockSpec((nb, C, t), lambda i, j: (i, 0, j)),
            pl.BlockSpec((1, C, 1), lambda i, j: (0, 0, 0)),
            pl.BlockSpec((1, C, 1), lambda i, j: (0, 0, 0)),
        ],
        out_specs=pl.BlockSpec((nb, C, t), lambda i, j: (i, 0, j)),
        compiler_params=pltpu.CompilerParams(
            dimension_semantics=("parallel", "parallel"),
            vmem_limit_bytes=48 * 1024 * 1024),
    )(x3, g3, b3)
    return out.reshape(N, C, H, W)


# ----------------------------------------------------------------------------
# Pure-JAX reference (matches the PyTorch module exactly)
# ----------------------------------------------------------------------------
def reference_forward(x, g, b, eps=1e-5):
    mean = jnp.mean(x, axis=1, keepdims=True)
    var = jnp.mean(jnp.square(x - mean), axis=1, keepdims=True)   # unbiased=False
    return (x - mean) / (jnp.sqrt(var) + eps) * g + b


# ----------------------------------------------------------------------------
# Main
# ----------------------------------------------------------------------------
if __name__ == "__main__":
    N, C, H, W = 2, 4, 16, 16

    key = jax.random.PRNGKey(0)
    k_x, k_g, k_b = jax.random.split(key, 3)

    x = jax.random.normal(k_x, (N, C, H, W), dtype=jnp.float32)
    # Module default init is g=1, b=0; perturb so the affine path is exercised.
    g = 1.0 + 0.1 * jax.random.normal(k_g, (1, C, 1, 1), dtype=jnp.float32)
    b = 0.1 * jax.random.normal(k_b, (1, C, 1, 1), dtype=jnp.float32)

    out = jax.block_until_ready(layernorm_forward(x, g, b))
    ref = jax.block_until_ready(reference_forward(x, g, b))

    assert out.shape == (N, C, H, W), out.shape
    assert out.dtype == x.dtype, out.dtype
    np.testing.assert_allclose(np.asarray(out), np.asarray(ref), rtol=1e-5, atol=1e-5)

    print("KERNEL_OK")
</pallas_src>

<mosaic_0001>
module attributes {stable_mosaic.version = 11 : i64} {
  func.func @_layernorm_kernel(%arg0: i32, %arg1: i32, %arg2: memref<1x4x256xf32, #tpu.memory_space<vmem>>, %arg3: memref<1x4x1xf32, #tpu.memory_space<vmem>>, %arg4: memref<1x4x1xf32, #tpu.memory_space<vmem>>, %arg5: memref<1x4x256xf32, #tpu.memory_space<vmem>>) attributes {dimension_semantics = [#tpu.dimension_semantics<parallel>, #tpu.dimension_semantics<parallel>], iteration_bounds = array<i64: 2, 1>, scalar_prefetch = 0 : i64, scratch_operands = 0 : i64, tpu.core_type = #tpu.core_type<tc>, window_params = [{transform_indices = @transform_0, window_bounds = array<i64: 1, 4, 256>}, {pipeline_mode = #tpu.pipeline_mode<synchronous>, transform_indices = @transform_1, window_bounds = array<i64: 1, 4, 1>}, {pipeline_mode = #tpu.pipeline_mode<synchronous>, transform_indices = @transform_2, window_bounds = array<i64: 1, 4, 1>}, {transform_indices = @transform_3, window_bounds = array<i64: 1, 4, 256>}]} {
    %c0 = arith.constant 0 : index
    %c0_0 = arith.constant 0 : index
    %c0_1 = arith.constant 0 : index
    %0 = vector.load %arg2[%c0, %c0_0, %c0_1] : memref<1x4x256xf32, #tpu.memory_space<vmem>>, vector<1x4x256xf32>
    %cst = arith.constant dense<0.000000e+00> : vector<1x256xf32>
    %1 = vector.multi_reduction <add>, %0, %cst [1] : vector<1x4x256xf32> to vector<1x256xf32>
    %2 = vector.shape_cast %1 : vector<1x256xf32> to vector<1x1x256xf32>
    %cst_2 = arith.constant 2.500000e-01 : f32
    %3 = vector.broadcast %cst_2 : f32 to vector<1x1x256xf32>
    %4 = arith.mulf %2, %3 : vector<1x1x256xf32>
    %5 = vector.broadcast %4 : vector<1x1x256xf32> to vector<1x4x256xf32>
    %6 = arith.subf %0, %5 : vector<1x4x256xf32>
    %7 = arith.mulf %6, %6 : vector<1x4x256xf32>
    %cst_3 = arith.constant dense<0.000000e+00> : vector<1x256xf32>
    %8 = vector.multi_reduction <add>, %7, %cst_3 [1] : vector<1x4x256xf32> to vector<1x256xf32>
    %9 = vector.shape_cast %8 : vector<1x256xf32> to vector<1x1x256xf32>
    %cst_4 = arith.constant 2.500000e-01 : f32
    %10 = vector.broadcast %cst_4 : f32 to vector<1x1x256xf32>
    %11 = arith.mulf %9, %10 : vector<1x1x256xf32>
    %12 = math.sqrt %11 : vector<1x1x256xf32>
    %cst_5 = arith.constant 9.99999974E-6 : f32
    %13 = vector.broadcast %cst_5 : f32 to vector<1x1x256xf32>
    %14 = arith.addf %12, %13 : vector<1x1x256xf32>
    %15 = tpu.reciprocal %14 : vector<1x1x256xf32> -> vector<1x1x256xf32>
    %16 = vector.broadcast %15 : vector<1x1x256xf32> to vector<1x4x256xf32>
    %17 = arith.mulf %6, %16 : vector<1x4x256xf32>
    %c0_6 = arith.constant 0 : index
    %c0_7 = arith.constant 0 : index
    %c0_8 = arith.constant 0 : index
    %18 = vector.load %arg3[%c0_6, %c0_7, %c0_8] : memref<1x4x1xf32, #tpu.memory_space<vmem>>, vector<1x4x1xf32>
    %19 = vector.broadcast %18 : vector<1x4x1xf32> to vector<1x4x256xf32>
    %20 = arith.mulf %17, %19 : vector<1x4x256xf32>
    %c0_9 = arith.constant 0 : index
    %c0_10 = arith.constant 0 : index
    %c0_11 = arith.constant 0 : index
    %21 = vector.load %arg4[%c0_9, %c0_10, %c0_11] : memref<1x4x1xf32, #tpu.memory_space<vmem>>, vector<1x4x1xf32>
    %22 = vector.broadcast %21 : vector<1x4x1xf32> to vector<1x4x256xf32>
    %23 = arith.addf %20, %22 : vector<1x4x256xf32>
    %c0_12 = arith.constant 0 : index
    %c0_13 = arith.constant 0 : index
    %c0_14 = arith.constant 0 : index
    %24 = vector.load %arg5[%c0_12, %c0_13, %c0_14] : memref<1x4x256xf32, #tpu.memory_space<vmem>>, vector<1x4x256xf32>
    tpu.vector_store %arg5[%c0_12, %c0_13, %c0_14], %23 {strides = array<i32>} : memref<1x4x256xf32, #tpu.memory_space<vmem>>, vector<1x4x256xf32>,
    return
  }
  func.func @transform_0(%arg0: i32, %arg1: i32) -> (i32, i32, i32) {
    %c0_i32 = arith.constant 0 : i32
    %c0_i32_0 = arith.constant 0 : i32
    return %arg0, %c0_i32, %arg1 : i32, i32, i32
  }
  func.func @transform_1(%arg0: i32, %arg1: i32) -> (i32, i32, i32) {
    %c0_i32 = arith.constant 0 : i32
    %c0_i32_0 = arith.constant 0 : i32
    %c0_i32_1 = arith.constant 0 : i32
    %c0_i32_2 = arith.constant 0 : i32
    return %c0_i32, %c0_i32_0, %c0_i32_1 : i32, i32, i32
  }
  func.func @transform_2(%arg0: i32, %arg1: i32) -> (i32, i32, i32) {
    %c0_i32 = arith.constant 0 : i32
    %c0_i32_0 = arith.constant 0 : i32
    %c0_i32_1 = arith.constant 0 : i32
    %c0_i32_2 = arith.constant 0 : i32
    return %c0_i32, %c0_i32_0, %c0_i32_1 : i32, i32, i32
  }
  func.func @transform_3(%arg0: i32, %arg1: i32) -> (i32, i32, i32) {
    %c0_i32 = arith.constant 0 : i32
    %c0_i32_0 = arith.constant 0 : i32
    return %arg0, %c0_i32, %arg1 : i32, i32, i32
  }
}

</mosaic_0001>

<llo_original>
// kernel: tpu_custom_call.1
$region0: #{tpu_custom_call.1}
  #allocation0 [shape = 'u32[]', space=smem, size = 0x4, offset = 0x4, fixed_abs, tag = 'smem constant byte address 0x4 - core index']
  #allocation1 [shape = 'u32[72,128]{1,0:T(1,128)}', space=vmem, size = 0x9000, scoped, tag = 'internal scratch']
  %s0 = inlined_call_operand.hbm [shape: f32[2,4,256], index: 0, kind: input, shape index: {}]
  %s1 = inlined_call_operand.vmem [shape: f32[1,4,1], index: 1, kind: input, shape index: {}]
  %s2 = inlined_call_operand.vmem [shape: f32[1,4,1], index: 2, kind: input, shape index: {}]
  %s3 = inlined_call_operand.hbm [shape: f32[2,4,256], index: 3, kind: output, shape index: {}]
  %s4 = sld [smem:[#allocation0]]
  $region49: #{tpu_custom_call.1} parent=0
    _
  %s6 = ssub.s32 1, %s4
  %s7 = scalar_select 0, %s6, %s4
  $region1: #{tpu_custom_call.1} parent=0
    #allocation2 [shape = 'u8[8192]{0}', space=vmem, size = 0x2000, scoped, tag = 'input window, operand 0']
    #allocation3 [shape = 's32[2]{0}', space=sflag, size = 0x8, scoped, tag = 'scoped memory for tpu_custom_call.1']
    #allocation4 [shape = 's32[2]{0}', space=sflag, size = 0x8, scoped, tag = 'scoped memory for tpu_custom_call.1']
    #allocation5 [shape = 'u8[8192]{0}', space=vmem, size = 0x2000, scoped, tag = 'output window, operand 0']
    %8 = vsyncpa [#allocation3], 0
    %s9 = scalar_lea.sflag [#allocation3], 1
    %10 = vsyncpa %s9, 0
    %11 = vsyncpa [#allocation4], 0
    %s12 = scalar_lea.sflag [#allocation4], 1
    %13 = vsyncpa %s12, 0
    loop: start=0, step=1, limit=4
    $region2: #{tpu_custom_call.1} parent=1 // loop_pre_header
      _
    $region3: #{tpu_custom_call.1} parent=1 // loop_header
      %s15 = sphi 0, %s19
      %p16 = scmp.ge.s32.totalorder %s15, 4
      %s22 = sphi 0, %s34
      %s23 = sphi 0, %s30
      %s24 = sphi 0, %s22
      %s25 = sphi 0, %s23
      %s26 = sphi 0, %s24
      %s27 = sphi 0, %s25
      %s39 = sphi 0, %s41
      %s42 = sphi 0, %s39
      %s43 = sphi 0, %s42
      %s59 = sphi 0, %s43
      %s63 = sphi 0, %s63
      %s65 = sphi 0, %s63
      %s66 = sphi 0, %s65
      %s80 = sphi 0, %s66
      %s84 = sphi 0, %s84
      %s86 = sphi 0, %s84
      %s87 = sphi 0, %s86
      %s101 = sphi 0, %s87
      %s109 = sphi 0, %s111
      %s112 = sphi 0, %s109
      %s113 = sphi 0, %s112
      %s129 = sphi 0, %s113
    $region4: #{tpu_custom_call.1} parent=1 // loop_header_branch
      %18 = sbr.rel (%p16) target = $region8
    $region5: #{tpu_custom_call.1} parent=1 // loop_body
      %s20 = ssub.s32 %s15, 1
      %s21 = ssub.s32 %s15, 2
      %s28 = sadd.s32 1, %s23
      %p29 = scmp.ge.s32.totalorder %s28, 1
      %s30 = scalar_select %p29, 0, %s28
      %s31 = sadd.s32 1, %s22
      %s32 = scalar_select %p29, %s31, %s22
      %p33 = scmp.ge.s32.totalorder %s32, 2
      %s34 = scalar_select %p33, 0, %s32
      %s35 = ssub.s32 %s22, %s34
      %s36 = ssub.s32 %s23, %s30
      %s37 = sor.u32 %s35, %s36
      %p38 = scmp.eq.s32.totalorder %s37, 0
      %s40 = sadd.s32 %s39, 1
      %s41 = scalar_select %p38, %s39, %s40
      %p44 = pneg %p38
      %p45 = scmp.eq.s32.totalorder %s15, 1
      %p46 = por %p44, %p45
      %p47 = scmp.ne.s32.totalorder %s39, %s42
      %p48 = scmp.eq.s32.totalorder %s15, 0
      %p49 = por %p47, %p48
      %p50 = scmp.ne.s32.totalorder %s39, %s42
      %p51 = scmp.eq.s32.totalorder %s20, 1
      %p52 = por %p50, %p51
      %p53 = scmp.ne.s32.totalorder %s42, %s43
      %p54 = scmp.eq.s32.totalorder %s20, 0
      %p55 = por %p53, %p54
      %p56 = scmp.ne.s32.totalorder %s42, %s43
      %p57 = scmp.eq.s32.totalorder %s21, 1
      %p58 = por %p56, %p57
      %p60 = scmp.ne.s32.totalorder %s43, %s59
      %p61 = scmp.eq.s32.totalorder %s21, 0
      %p62 = por %p60, %p61
      %s64 = sadd.s32 %s63, 1
      %p67 = scmp.eq.s32.totalorder %s15, 1
      %p68 = scmp.ne.s32.totalorder %s63, %s65
      %p69 = scmp.eq.s32.totalorder %s15, 0
      %p70 = por %p68, %p69
      %p71 = scmp.ne.s32.totalorder %s63, %s65
      %p72 = scmp.eq.s32.totalorder %s20, 1
      %p73 = por %p71, %p72
      %p74 = scmp.ne.s32.totalorder %s65, %s66
      %p75 = scmp.eq.s32.totalorder %s20, 0
      %p76 = por %p74, %p75
      %p77 = scmp.ne.s32.totalorder %s65, %s66
      %p78 = scmp.eq.s32.totalorder %s21, 1
      %p79 = por %p77, %p78
      %p81 = scmp.ne.s32.totalorder %s66, %s80
      %p82 = scmp.eq.s32.totalorder %s21, 0
      %p83 = por %p81, %p82
      %s85 = sadd.s32 %s84, 1
      %p88 = scmp.eq.s32.totalorder %s15, 1
      %p89 = scmp.ne.s32.totalorder %s84, %s86
      %p90 = scmp.eq.s32.totalorder %s15, 0
      %p91 = por %p89, %p90
      %p92 = scmp.ne.s32.totalorder %s84, %s86
      %p93 = scmp.eq.s32.totalorder %s20, 1
      %p94 = por %p92, %p93
      %p95 = scmp.ne.s32.totalorder %s86, %s87
      %p96 = scmp.eq.s32.totalorder %s20, 0
      %p97 = por %p95, %p96
      %p98 = scmp.ne.s32.totalorder %s86, %s87
      %p99 = scmp.eq.s32.totalorder %s21, 1
      %p100 = por %p98, %p99
      %p102 = scmp.ne.s32.totalorder %s87, %s101
      %p103 = scmp.eq.s32.totalorder %s21, 0
      %p104 = por %p102, %p103
      %s105 = ssub.s32 %s22, %s34
      %s106 = ssub.s32 %s23, %s30
      %s107 = sor.u32 %s105, %s106
      %p108 = scmp.eq.s32.totalorder %s107, 0
      %s110 = sadd.s32 %s109, 1
      %s111 = scalar_select %p108, %s109, %s110
      %p114 = pneg %p108
      %p115 = scmp.eq.s32.totalorder %s15, 1
      %p116 = por %p114, %p115
      %p117 = scmp.ne.s32.totalorder %s109, %s112
      %p118 = scmp.eq.s32.totalorder %s15, 0
      %p119 = por %p117, %p118
      %p120 = scmp.ne.s32.totalorder %s109, %s112
      %p121 = scmp.eq.s32.totalorder %s20, 1
      %p122 = por %p120, %p121
      %p123 = scmp.ne.s32.totalorder %s112, %s113
      %p124 = scmp.eq.s32.totalorder %s20, 0
      %p125 = por %p123, %p124
      %p126 = scmp.ne.s32.totalorder %s112, %s113
      %p127 = scmp.eq.s32.totalorder %s21, 1
      %p128 = por %p126, %p127
      %p130 = scmp.ne.s32.totalorder %s113, %s129
      %p131 = scmp.eq.s32.totalorder %s21, 0
      %p132 = por %p130, %p131
      %p133 = scmp.le.s32.totalorder 1, %s15
      %p134 = scmp.lt.s32.totalorder %s15, 3
      %p135 = pnand %p133, %p134
      %p136 = pneg %p135
      // Predicated region
      $region9: #{tpu_custom_call.1} parent=5 // pred_check
        _
      $region10: #{tpu_custom_call.1} parent=5 // pred_check_branch
        %138 = sbr.rel (%p135) target = $region12
      $region11: #{tpu_custom_call.1} parent=5 // pred_region
        %s139 = ssub.s32 %s15, 1
        // Predicated region
        $region13: #{tpu_custom_call.1} parent=11 // pred_check
          %p140 = pneg %p76
        $region14: #{tpu_custom_call.1} parent=11 // pred_check_branch
          %142 = sbr.rel (%p140) target = $region16
        $region15: #{tpu_custom_call.1} parent=11 // pred_region
          _
        $region16: #{tpu_custom_call.1} parent=11 // pred_fallthru
          _
        // Predicated region
        $region17: #{tpu_custom_call.1} parent=11 // pred_check
          %p143 = pneg %p97
        $region18: #{tpu_custom_call.1} parent=11 // pred_check_branch
          %145 = sbr.rel (%p143) target = $region20
        $region19: #{tpu_custom_call.1} parent=11 // pred_region
          _
        $region20: #{tpu_custom_call.1} parent=11 // pred_fallthru
          _
      $region12: #{tpu_custom_call.1} parent=5 // pred_fallthru
        _
      %p146 = scmp.lt.s32.totalorder %s15, 2
      // Predicated region
      $region21: #{tpu_custom_call.1} parent=5 // pred_check
        %p147 = pneg %p146
      $region22: #{tpu_custom_call.1} parent=5 // pred_check_branch
        %149 = sbr.rel (%p147) target = $region24
      $region23: #{tpu_custom_call.1} parent=5 // pred_region
        // Predicated region
        $region25: #{tpu_custom_call.1} parent=23 // pred_check
          %p150 = pneg %p49
        $region26: #{tpu_custom_call.1} parent=23 // pred_check_branch
          %152 = sbr.rel (%p150) target = $region28
        $region27: #{tpu_custom_call.1} parent=23 // pred_region
          %s153 = sand.u32 %s39, 1
          %s154 = scalar_lea.sflag [#allocation3], %s153
          %s155 = sand.u32 %s39, 1
          %s156 = smul.addr %s155, 8
          %s157 = scalar_lea.vmem [#allocation2], %s156
          %s158 = smul.u32 2, %s23
          %160 = vsyncadd %s154, 0
          %s161 = smul.addr %s22, 2
          %s162 = sadd.s32 %s158, %s161
          %s163 = smul.addr %s162, 4
          %s164 = scalar_lea.hbm %s0, %s163
          %s166 = sshll.u32 %s164, 4
          %s167 = int_to_ptr.hbm [resolvable:$true] %s166
          %s168 = sshll.u32 %s157, 4
          %s169 = int_to_ptr.vmem [resolvable:$true] %s168
          %171 = dma.hbm_to_vmem [thread:$0]  %s167, 128, %s169, %s154
        $region28: #{tpu_custom_call.1} parent=23 // pred_fallthru
          _
      $region24: #{tpu_custom_call.1} parent=5 // pred_fallthru
        _
      %p172 = scmp.le.s32.totalorder 1, %s15
      %p173 = scmp.lt.s32.totalorder %s15, 3
      %p174 = pnand %p172, %p173
      %p175 = pneg %p174
      // Predicated region
      $region29: #{tpu_custom_call.1} parent=5 // pred_check
        _
      $region30: #{tpu_custom_call.1} parent=5 // pred_check_branch
        %177 = sbr.rel (%p174) target = $region32
      $region31: #{tpu_custom_call.1} parent=5 // pred_region
        %s178 = ssub.s32 %s15, 1
        %s179 = sand.u32 %s42, 1
        %s180 = scalar_lea.sflag [#allocation3], %s179
        %s181 = sand.u32 %s42, 1
        %s182 = smul.addr %s181, 8
        %s183 = scalar_lea.vmem [#allocation2], %s182
        // Predicated region
        $region33: #{tpu_custom_call.1} parent=31 // pred_check
          %p184 = pneg %p55
        $region34: #{tpu_custom_call.1} parent=31 // pred_check_branch
          %186 = sbr.rel (%p184) target = $region36
        $region35: #{tpu_custom_call.1} parent=31 // pred_region
          %188 = dma.done %s180, 128
        $region36: #{tpu_custom_call.1} parent=31 // pred_fallthru
          _
        %s189 = sand.u32 %s42, 1
        %s190 = scalar_lea.sflag [#allocation3], %s189
        %s191 = sand.u32 %s42, 1
        %s192 = smul.addr %s191, 8
        %s193 = scalar_lea.vmem [#allocation2], %s192
        %p194 = pneg %p55
        %p195 = pneg %p52
        %p196 = pneg %p76
        %p197 = pneg %p73
        %p198 = pneg %p97
        %p199 = pneg %p94
        %p200 = pneg %p125
        %p201 = pneg %p122
        %s202 = sand.u32 %s112, 1
        %s203 = scalar_lea.sflag [#allocation4], %s202
        %s204 = sand.u32 %s112, 1
        %s205 = smul.addr %s204, 8
        %s206 = scalar_lea.vmem [#allocation5], %s205
        %s207 = smul.u32 2, %s25
        %s208 = smul.u32 2, %s25
        %v209 = vld [vmem:[%s183] sm:$0xff]
        %211 = vst [vmem:[#allocation1] ss:$2 sm:$0xff] %v209
        %v212 = vld.sshfl [vmem:[#allocation1] sm:$0xff pattern:$0x75316420]
        %v213 = vld.sshfl [vmem:[#allocation1 + $0x8] sm:$0xff pattern:$0x75316420]
        %vm216 = vcmask 1043456
        %v217 = vsel %vm216, %v212, 0.0
        %v218 = vrot.slane %v217, 4
        %v219 = vadd.f32 %v217, %v218
        %v220 = vrot.slane %v219, 2
        %v221 = vadd.f32 %v219, %v220
        %v222 = vrot.slane %v221, 1
        %v223 = vadd.f32 %v221, %v222
        %v224 = vsel %vm216, %v213, 0.0
        %v225 = vrot.slane %v224, 4
        %v226 = vadd.f32 %v224, %v225
        %v227 = vrot.slane %v226, 2
        %v228 = vadd.f32 %v226, %v227
        %v229 = vrot.slane %v228, 1
        %v230 = vadd.f32 %v228, %v229
        %v231 = vmul.f32 %v223, 0.25
        %v232 = vmul.f32 %v230, 0.25
        %v235 = vrot.slane %v232, 4
        %v236 = vsel %vm216, %v231, %v235
        %v238 = vsub.f32 %v209, %v236
        %v239 = vmul.f32 %v238, %v238
        %241 = vst [vmem:[#allocation1] ss:$2 sm:$0xff] %v239
        %v242 = vld.sshfl [vmem:[#allocation1] sm:$0xff pattern:$0x75316420]
        %v243 = vld.sshfl [vmem:[#allocation1 + $0x8] sm:$0xff pattern:$0x75316420]
        %v246 = vsel %vm216, %v242, 0.0
        %v247 = vrot.slane %v246, 4
        %v248 = vadd.f32 %v246, %v247
        %v249 = vrot.slane %v248, 2
        %v250 = vadd.f32 %v248, %v249
        %v251 = vrot.slane %v250, 1
        %v252 = vadd.f32 %v250, %v251
        %v253 = vsel %vm216, %v243, 0.0
        %v254 = vrot.slane %v253, 4
        %v255 = vadd.f32 %v253, %v254
        %v256 = vrot.slane %v255, 2
        %v257 = vadd.f32 %v255, %v256
        %v258 = vrot.slane %v257, 1
        %v259 = vadd.f32 %v257, %v258
        %v260 = vmul.f32 %v252, 0.25
        %v261 = vmul.f32 %v259, 0.25
        %v262 = vrsqrt.pop %v260
        %v263 = vmul.f32 %v262, %v260
        %v264 = vmul.f32 %v263, %v262
        %v265 = vmul.f32 0.5, %v264
        %v266 = vsub.f32 1.5, %v265
        %v267 = vmul.f32 %v262, %v266
        %v268 = vmul.f32 %v260, %v267
        %vm269 = vcmp.eq.f32.partialorder %v260, inf
        %v270 = vsel %vm269, %v260, %v268
        %vm271 = vcmp.eq.f32.partialorder %v260, 0.0
        %v272 = vand.u32 %v260, 2147483648
        %v273 = vsel %vm271, %v272, %v270
        %v274 = vrsqrt.pop %v261
        %v275 = vmul.f32 %v274, %v261
        %v276 = vmul.f32 %v275, %v274
        %v277 = vmul.f32 0.5, %v276
        %v278 = vsub.f32 1.5, %v277
        %v279 = vmul.f32 %v274, %v278
        %v280 = vmul.f32 %v261, %v279
        %vm281 = vcmp.eq.f32.partialorder %v261, inf
        %v282 = vsel %vm281, %v261, %v280
        %vm283 = vcmp.eq.f32.partialorder %v261, 0.0
        %v284 = vand.u32 %v261, 2147483648
        %v285 = vsel %vm283, %v284, %v282
        %v286 = vadd.f32 %v273, 1e-05
        %v287 = vadd.f32 %v285, 1e-05
        %v288 = vrcp.pop %v286
        %v289 = vmul.f32 %v286, %v288
        %v290 = vsub.f32 1.0, %v289
        %v291 = vmul.f32 %v288, %v290
        %v292 = vadd.f32 %v288, %v291
        %vm293 = vweird.f32 %v286
        %vm294 = vweird.f32 %v288
        %vm295 = vmor %vm293, %vm294
        %v296 = vsel %vm295, %v288, %v292
        %v297 = vand.u32 2147483647, %v286
        %vm298 = vcmp.eq.f32.partialorder %v297, 8.507059e+37
        %v299 = vand.u32 %v286, 2147483648
        %v300 = vor.u32 1.1754944e-38, %v299
        %v301 = vsel %vm298, %v300, %v296
        %v302 = vrcp.pop %v287
        %v303 = vmul.f32 %v287, %v302
        %v304 = vsub.f32 1.0, %v303
        %v305 = vmul.f32 %v302, %v304
        %v306 = vadd.f32 %v302, %v305
        %vm307 = vweird.f32 %v287
        %vm308 = vweird.f32 %v302
        %vm309 = vmor %vm307, %vm308
        %v310 = vsel %vm309, %v302, %v306
        %v311 = vand.u32 2147483647, %v287
        %vm312 = vcmp.eq.f32.partialorder %v311, 8.507059e+37
        %v313 = vand.u32 %v287, 2147483648
        %v314 = vor.u32 1.1754944e-38, %v313
        %v315 = vsel %vm312, %v314, %v310
        %v318 = vrot.slane %v315, 4
        %v319 = vsel %vm216, %v301, %v318
        %v321 = vmul.f32 %v238, %v319
        %v322 = vld [vmem:[%s1] sm:$0xf]
        %324 = vset.pattern.permute.xlu0 0
        %325 = vperm.xlu0 %324, %v322
        %v326 = vpop.permute.xlu0 %325
        %v328 = vunpack.c.l.s4 839922192
        %v329 = vunpack.c.0.s8 %v328
        %v330 = vperm.slane %v326, %v329
        %v332 = vmul.f32 %v321, %v330
        %v333 = vld [vmem:[%s2] sm:$0xf]
        %335 = vset.pattern.permute.xlu0 0
        %336 = vperm.xlu0 %335, %v333
        %v337 = vpop.permute.xlu0 %336
        %v339 = vunpack.c.l.s4 839922192
        %v340 = vunpack.c.0.s8 %v339
        %v341 = vperm.slane %v337, %v340
        %v343 = vadd.f32 %v332, %v341
        %344 = vst [vmem:[%s206] sm:$0xff] %v343
        %s345 = sand.u32 %s112, 1
        %s346 = scalar_lea.sflag [#allocation4], %s345
        %s347 = sand.u32 %s112, 1
        %s348 = smul.addr %s347, 8
        %s349 = scalar_lea.vmem [#allocation5], %s348
        // Predicated region
        $region37: #{tpu_custom_call.1} parent=31 // pred_check
          %p350 = pneg %p122
        $region38: #{tpu_custom_call.1} parent=31 // pred_check_branch
          %352 = sbr.rel (%p350) target = $region40
        $region39: #{tpu_custom_call.1} parent=31 // pred_region
          %s353 = smul.u32 2, %s25
          %355 = vsyncadd %s346, 0
          %s356 = smul.addr %s24, 2
          %s357 = sadd.s32 %s353, %s356
          %s358 = smul.addr %s357, 4
          %s359 = scalar_lea.hbm %s3, %s358
          %s361 = sshll.u32 %s349, 4
          %s362 = int_to_ptr.vmem [resolvable:$true] %s361
          %s363 = sshll.u32 %s359, 4
          %s364 = int_to_ptr.hbm [resolvable:$true] %s363
          %366 = dma.vmem_to_hbm [thread:$0]  %s362, 128, %s364, %s346
        $region40: #{tpu_custom_call.1} parent=31 // pred_fallthru
          _
      $region32: #{tpu_custom_call.1} parent=5 // pred_fallthru
        _
      %p367 = scmp.le.s32.totalorder 2, %s15
      // Predicated region
      $region41: #{tpu_custom_call.1} parent=5 // pred_check
        %p368 = pneg %p367
      $region42: #{tpu_custom_call.1} parent=5 // pred_check_branch
        %370 = sbr.rel (%p368) target = $region44
      $region43: #{tpu_custom_call.1} parent=5 // pred_region
        %s371 = ssub.s32 %s15, 2
        // Predicated region
        $region45: #{tpu_custom_call.1} parent=43 // pred_check
          %p372 = pneg %p128
        $region46: #{tpu_custom_call.1} parent=43 // pred_check_branch
          %374 = sbr.rel (%p372) target = $region48
        $region47: #{tpu_custom_call.1} parent=43 // pred_region
          %s375 = sand.u32 %s113, 1
          %s376 = scalar_lea.sflag [#allocation4], %s375
          %s377 = sand.u32 %s113, 1
          %s378 = smul.addr %s377, 8
          %s379 = scalar_lea.vmem [#allocation5], %s378
          %381 = dma.done %s376, 128
        $region48: #{tpu_custom_call.1} parent=43 // pred_fallthru
          _
      $region44: #{tpu_custom_call.1} parent=5 // pred_fallthru
        _
    $region6: #{tpu_custom_call.1} parent=1 // loop_footer
      %s19 = sadd.s32 1, %s15
    $region7: #{tpu_custom_call.1} parent=1 // loop_footer_branch
      %14 = sbr.rel target = $region3
    $region8: #{tpu_custom_call.1} parent=1 // loop_exit
      _
    %382 = vsyncpa [#allocation3], 1
    %s383 = scalar_lea.sflag [#allocation3], 1
    %384 = vsyncpa %s383, 1
    %385 = vsyncpa [#allocation4], 1
    %s386 = scalar_lea.sflag [#allocation4], 1
    %387 = vsyncpa %s386, 1

</llo_original>
